<compile_context>
chip_gen: v7x
topology: tpu7x:2x2x1
jax: 0.10.0
libtpu: 0.0.40
codegen_flags: <defaults>
</compile_context>

<pallas_src>
import functools

import jax
import jax.numpy as jnp
from jax.experimental import pallas as pl
from jax.experimental.pallas import tpu as pltpu

_MID = 128  # middle_size in the PyTorch module


def _round_up(x, m):
    return ((x + m - 1) // m) * m


def _mlp_kernel(x_ref, w1_ref, b1_ref, w2_ref, b2_ref, w3_ref, b3_ref, o_ref):
    # One batch tile per grid step; all three matmuls + ReLUs fused in VMEM.
    # Casts to bf16 happen here (on-chip), accumulation / bias / ReLU in f32.
    x = x_ref[...].astype(jnp.bfloat16)
    w1 = w1_ref[...].astype(jnp.bfloat16)
    w2 = w2_ref[...].astype(jnp.bfloat16)
    w3 = w3_ref[...].astype(jnp.bfloat16)

    h1 = jnp.dot(x, w1, preferred_element_type=jnp.float32) + b1_ref[...]
    h1 = jnp.maximum(h1, 0.0)
    h2 = (
        jnp.dot(h1.astype(jnp.bfloat16), w2, preferred_element_type=jnp.float32)
        + b2_ref[...]
    )
    h2 = jnp.maximum(h2, 0.0)
    out = (
        jnp.dot(h2.astype(jnp.bfloat16), w3, preferred_element_type=jnp.float32)
        + b3_ref[...]
    )
    o_ref[...] = out.astype(o_ref.dtype)


def _choose_block_b(B, in_sz, out_sz, out_bytes, mid=_MID,
                    tile_budget_bytes=8 * 1024 * 1024):
    """Batch tile: as large as an 8 MiB tile budget allows (double-buffered
    x/out tiles + f32 intermediates), <=1024, multiple of 8, and capped so the
    grid has >= 2 steps whenever B allows it (v7x 2-TensorCore sharding).
    The budget leaves headroom on v5e's 16 MiB scoped-VMEM default."""
    per_row = 2 * in_sz * 4 + 2 * out_sz * out_bytes + (2 * mid + out_sz) * 4
    bb = tile_budget_bytes // max(per_row, 1)
    bb = min(bb, 1024)
    if B > 8:
        bb = min(bb, _round_up(pl.cdiv(B, 2), 8))
    bb = max(8, (bb // 8) * 8)
    return int(bb)


@functools.partial(jax.jit, static_argnames=("block_b", "out_dtype"))
def contrastive_encoder_forward(x, params, block_b=None, out_dtype=jnp.bfloat16):
    """x: (B, input_size) float32. params: w1,b1,w2,b2,w3,b3 with weights
    stored as (in_features, out_features).

    Contract: matmuls run on the MXU in bf16 with f32 accumulation, and the
    result is returned in `out_dtype` (default bf16 -- what a downstream
    contrastive loss typically consumes). Pass out_dtype=jnp.float32 for a
    full-precision output buffer.
    """
    w1, b1 = params["w1"], params["b1"]
    w2, b2 = params["w2"], params["b2"]
    w3, b3 = params["w3"], params["b3"]

    B, in_sz = x.shape
    mid = w1.shape[1]
    out_sz = w3.shape[1]
    out_bytes = jnp.dtype(out_dtype).itemsize

    if block_b is None:
        block_b = _choose_block_b(B, in_sz, out_sz, out_bytes, mid=mid)
    block_b = max(8, _round_up(int(block_b), 8))

    # No batch padding: ragged last block is masked by Pallas on store.
    grid = (pl.cdiv(B, block_b),)

    # Biases as (1, N) f32 rows (broadcast on the VPU inside the kernel).
    b1r = b1.reshape(1, mid).astype(jnp.float32)
    b2r = b2.reshape(1, mid).astype(jnp.float32)
    b3r = b3.reshape(1, out_sz).astype(jnp.float32)

    flops = 2 * B * (in_sz * mid + mid * mid + mid * out_sz)
    bytes_accessed = (
        B * in_sz * 4                                      # x (f32, read once)
        + (in_sz * mid + mid * mid + mid * out_sz) * 4     # weights (f32)
        + (2 * mid + out_sz) * 4                           # biases (f32)
        + B * out_sz * out_bytes                           # output
    )

    out = pl.pallas_call(
        _mlp_kernel,
        out_shape=jax.ShapeDtypeStruct((B, out_sz), out_dtype),
        grid_spec=pltpu.PrefetchScalarGridSpec(
            num_scalar_prefetch=0,
            grid=grid,
            in_specs=[
                pl.BlockSpec((block_b, in_sz), lambda i: (i, 0)),  # x tile
                pl.BlockSpec((in_sz, mid), lambda i: (0, 0)),      # w1
                pl.BlockSpec((1, mid), lambda i: (0, 0)),          # b1
                pl.BlockSpec((mid, mid), lambda i: (0, 0)),        # w2
                pl.BlockSpec((1, mid), lambda i: (0, 0)),          # b2
                pl.BlockSpec((mid, out_sz), lambda i: (0, 0)),     # w3
                pl.BlockSpec((1, out_sz), lambda i: (0, 0)),       # b3
            ],
            # Output block's last dim equals the full array width (no pad to
            # 128, no wrapper slice); batch rows written where valid.
            out_specs=pl.BlockSpec((block_b, out_sz), lambda i: (i, 0)),
        ),
        compiler_params=pltpu.CompilerParams(
            dimension_semantics=("parallel",),
            vmem_limit_bytes=32 * 1024 * 1024,
        ),
        cost_estimate=pl.CostEstimate(
            flops=flops, transcendentals=0, bytes_accessed=bytes_accessed
        ),
    )(x, w1, b1r, w2, b2r, w3, b3r)

    return out


def init_params(key, input_size, output_size, middle_size=_MID):
    """Deterministic init mimicking PyTorch nn.Linear default
    (uniform +-1/sqrt(fan_in)); weights stored as (in_features, out_features)."""
    def linear_init(k, fan_in, fan_out):
        kw, kb = jax.random.split(k)
        bound = 1.0 / jnp.sqrt(fan_in)
        w = jax.random.uniform(kw, (fan_in, fan_out), jnp.float32, -bound, bound)
        b = jax.random.uniform(kb, (fan_out,), jnp.float32, -bound, bound)
        return w, b

    k1, k2, k3 = jax.random.split(key, 3)
    w1, b1 = linear_init(k1, input_size, middle_size)
    w2, b2 = linear_init(k2, middle_size, middle_size)
    w3, b3 = linear_init(k3, middle_size, output_size)
    return {"w1": w1, "b1": b1, "w2": w2, "b2": b2, "w3": w3, "b3": b3}


def reference_forward(x, p):
    h1 = jnp.maximum(x @ p["w1"] + p["b1"], 0.0)
    h2 = jnp.maximum(h1 @ p["w2"] + p["b2"], 0.0)
    return h2 @ p["w3"] + p["b3"]


if __name__ == "__main__":
    key = jax.random.PRNGKey(0)
    k_param, k_x = jax.random.split(key)

    batch = 256          # auto block_b -> 128 => 2 'parallel' grid steps
    input_size = 32
    output_size = 16

    params = init_params(k_param, input_size, output_size)
    x = jax.random.normal(k_x, (batch, input_size), jnp.float32)

    out = contrastive_encoder_forward(x, params)   # bf16 output (documented)
    out = jax.block_until_ready(out)

    ref = reference_forward(x, params)
    assert out.shape == (batch, output_size), out.shape
    assert out.dtype == jnp.bfloat16, out.dtype
    # bf16 MXU operands + bf16 output store vs f32 reference -> small drift.
    assert jnp.allclose(out.astype(jnp.float32), ref, atol=5e-2, rtol=5e-2), \
        "mismatch vs reference"

    print("KERNEL_OK")
</pallas_src>

<mosaic_0001>
module attributes {stable_mosaic.version = 11 : i64} {
  func.func @_mlp_kernel(%arg0: i32, %arg1: memref<128x32xf32, #tpu.memory_space<vmem>>, %arg2: memref<32x128xf32, #tpu.memory_space<vmem>>, %arg3: memref<1x128xf32, #tpu.memory_space<vmem>>, %arg4: memref<128x128xf32, #tpu.memory_space<vmem>>, %arg5: memref<1x128xf32, #tpu.memory_space<vmem>>, %arg6: memref<128x16xf32, #tpu.memory_space<vmem>>, %arg7: memref<1x16xf32, #tpu.memory_space<vmem>>, %arg8: memref<128x16xbf16, #tpu.memory_space<vmem>>) attributes {dimension_semantics = [#tpu.dimension_semantics<parallel>], iteration_bounds = array<i64: 2>, scalar_prefetch = 0 : i64, scratch_operands = 0 : i64, tpu.core_type = #tpu.core_type<tc>, window_params = [{transform_indices = @transform_0, window_bounds = array<i64: 128, 32>}, {pipeline_mode = #tpu.pipeline_mode<synchronous>, transform_indices = @transform_1, window_bounds = array<i64: 32, 128>}, {pipeline_mode = #tpu.pipeline_mode<synchronous>, transform_indices = @transform_2, window_bounds = array<i64: 1, 128>}, {pipeline_mode = #tpu.pipeline_mode<synchronous>, transform_indices = @transform_3, window_bounds = array<i64: 128, 128>}, {pipeline_mode = #tpu.pipeline_mode<synchronous>, transform_indices = @transform_4, window_bounds = array<i64: 1, 128>}, {pipeline_mode = #tpu.pipeline_mode<synchronous>, transform_indices = @transform_5, window_bounds = array<i64: 128, 16>}, {pipeline_mode = #tpu.pipeline_mode<synchronous>, transform_indices = @transform_6, window_bounds = array<i64: 1, 16>}, {transform_indices = @transform_7, window_bounds = array<i64: 128, 16>}]} {
    %c0 = arith.constant 0 : index
    %c0_0 = arith.constant 0 : index
    %0 = vector.load %arg1[%c0, %c0_0] : memref<128x32xf32, #tpu.memory_space<vmem>>, vector<128x32xf32>
    %1 = arith.truncf %0 : vector<128x32xf32> to vector<128x32xbf16>
    %c0_1 = arith.constant 0 : index
    %c0_2 = arith.constant 0 : index
    %2 = vector.load %arg2[%c0_1, %c0_2] : memref<32x128xf32, #tpu.memory_space<vmem>>, vector<32x128xf32>
    %3 = arith.truncf %2 : vector<32x128xf32> to vector<32x128xbf16>
    %c0_3 = arith.constant 0 : index
    %c0_4 = arith.constant 0 : index
    %4 = vector.load %arg4[%c0_3, %c0_4] : memref<128x128xf32, #tpu.memory_space<vmem>>, vector<128x128xf32>
    %5 = arith.truncf %4 : vector<128x128xf32> to vector<128x128xbf16>
    %c0_5 = arith.constant 0 : index
    %c0_6 = arith.constant 0 : index
    %6 = vector.load %arg6[%c0_5, %c0_6] : memref<128x16xf32, #tpu.memory_space<vmem>>, vector<128x16xf32>
    %7 = arith.truncf %6 : vector<128x16xf32> to vector<128x16xbf16>
    %cst = arith.constant dense<0.000000e+00> : vector<128x128xf32>
    %8 = tpu.matmul %1, %3, %cst {dimension_numbers = #tpu.dot_dimension_numbers<[1], [0], [0], [1], [0, 0, 1, 1], [], []>} : vector<128x32xbf16>, vector<32x128xbf16>, vector<128x128xf32> -> vector<128x128xf32>
    %c0_7 = arith.constant 0 : index
    %c0_8 = arith.constant 0 : index
    %9 = vector.load %arg3[%c0_7, %c0_8] : memref<1x128xf32, #tpu.memory_space<vmem>>, vector<1x128xf32>
    %10 = vector.broadcast %9 : vector<1x128xf32> to vector<128x128xf32>
    %11 = arith.addf %8, %10 : vector<128x128xf32>
    %cst_9 = arith.constant 0.000000e+00 : f32
    %12 = vector.broadcast %cst_9 : f32 to vector<128x128xf32>
    %13 = arith.maximumf %11, %12 : vector<128x128xf32>
    %14 = arith.truncf %13 : vector<128x128xf32> to vector<128x128xbf16>
    %cst_10 = arith.constant dense<0.000000e+00> : vector<128x128xf32>
    %15 = tpu.matmul %14, %5, %cst_10 {dimension_numbers = #tpu.dot_dimension_numbers<[1], [0], [0], [1], [0, 0, 1, 1], [], []>} : vector<128x128xbf16>, vector<128x128xbf16>, vector<128x128xf32> -> vector<128x128xf32>
    %c0_11 = arith.constant 0 : index
    %c0_12 = arith.constant 0 : index
    %16 = vector.load %arg5[%c0_11, %c0_12] : memref<1x128xf32, #tpu.memory_space<vmem>>, vector<1x128xf32>
    %17 = vector.broadcast %16 : vector<1x128xf32> to vector<128x128xf32>
    %18 = arith.addf %15, %17 : vector<128x128xf32>
    %cst_13 = arith.constant 0.000000e+00 : f32
    %19 = vector.broadcast %cst_13 : f32 to vector<128x128xf32>
    %20 = arith.maximumf %18, %19 : vector<128x128xf32>
    %21 = arith.truncf %20 : vector<128x128xf32> to vector<128x128xbf16>
    %cst_14 = arith.constant dense<0.000000e+00> : vector<128x16xf32>
    %22 = tpu.matmul %21, %7, %cst_14 {dimension_numbers = #tpu.dot_dimension_numbers<[1], [0], [0], [1], [0, 0, 1, 1], [], []>} : vector<128x128xbf16>, vector<128x16xbf16>, vector<128x16xf32> -> vector<128x16xf32>
    %c0_15 = arith.constant 0 : index
    %c0_16 = arith.constant 0 : index
    %23 = vector.load %arg7[%c0_15, %c0_16] : memref<1x16xf32, #tpu.memory_space<vmem>>, vector<1x16xf32>
    %24 = vector.broadcast %23 : vector<1x16xf32> to vector<128x16xf32>
    %25 = arith.addf %22, %24 : vector<128x16xf32>
    %26 = arith.truncf %25 : vector<128x16xf32> to vector<128x16xbf16>
    %c0_17 = arith.constant 0 : index
    %c0_18 = arith.constant 0 : index
    %27 = vector.load %arg8[%c0_17, %c0_18] : memref<128x16xbf16, #tpu.memory_space<vmem>>, vector<128x16xbf16>
    tpu.vector_store %arg8[%c0_17, %c0_18], %26 {strides = array<i32>} : memref<128x16xbf16, #tpu.memory_space<vmem>>, vector<128x16xbf16>,
    return
  }
  func.func @transform_0(%arg0: i32) -> (i32, i32) {
    %c0_i32 = arith.constant 0 : i32
    %c0_i32_0 = arith.constant 0 : i32
    return %arg0, %c0_i32 : i32, i32
  }
  func.func @transform_1(%arg0: i32) -> (i32, i32) {
    %c0_i32 = arith.constant 0 : i32
    %c0_i32_0 = arith.constant 0 : i32
    %c0_i32_1 = arith.constant 0 : i32
    return %c0_i32, %c0_i32_0 : i32, i32
  }
  func.func @transform_2(%arg0: i32) -> (i32, i32) {
    %c0_i32 = arith.constant 0 : i32
    %c0_i32_0 = arith.constant 0 : i32
    %c0_i32_1 = arith.constant 0 : i32
    return %c0_i32, %c0_i32_0 : i32, i32
  }
  func.func @transform_3(%arg0: i32) -> (i32, i32) {
    %c0_i32 = arith.constant 0 : i32
    %c0_i32_0 = arith.constant 0 : i32
    %c0_i32_1 = arith.constant 0 : i32
    return %c0_i32, %c0_i32_0 : i32, i32
  }
  func.func @transform_4(%arg0: i32) -> (i32, i32) {
    %c0_i32 = arith.constant 0 : i32
    %c0_i32_0 = arith.constant 0 : i32
    %c0_i32_1 = arith.constant 0 : i32
    return %c0_i32, %c0_i32_0 : i32, i32
  }
  func.func @transform_5(%arg0: i32) -> (i32, i32) {
    %c0_i32 = arith.constant 0 : i32
    %c0_i32_0 = arith.constant 0 : i32
    %c0_i32_1 = arith.constant 0 : i32
    return %c0_i32, %c0_i32_0 : i32, i32
  }
  func.func @transform_6(%arg0: i32) -> (i32, i32) {
    %c0_i32 = arith.constant 0 : i32
    %c0_i32_0 = arith.constant 0 : i32
    %c0_i32_1 = arith.constant 0 : i32
    return %c0_i32, %c0_i32_0 : i32, i32
  }
  func.func @transform_7(%arg0: i32) -> (i32, i32) {
    %c0_i32 = arith.constant 0 : i32
    %c0_i32_0 = arith.constant 0 : i32
    return %arg0, %c0_i32 : i32, i32
  }
}

</mosaic_0001>

<llo_original>
// kernel: contrastive_encoder_forward.1
$region0: #{contrastive_encoder_forward.1}
  #allocation0 [shape = 'u32[]', space=smem, size = 0x4, offset = 0x4, fixed_abs, tag = 'smem constant byte address 0x4 - core index']
  #allocation1 [shape = 'u32[144,128]{1,0:T(1,128)}', space=vmem, size = 0x12000, scoped, tag = 'internal scratch']
  %s0 = inlined_call_operand.vmem [shape: f32[256,32], index: 0, kind: input, shape index: {}]
  %s1 = inlined_call_operand.vmem [shape: f32[32,128], index: 1, kind: input, shape index: {}]
  %s2 = inlined_call_operand.vmem [shape: f32[1,128], index: 2, kind: input, shape index: {}]
  %s3 = inlined_call_operand.vmem [shape: f32[128,128], index: 3, kind: input, shape index: {}]
  %s4 = inlined_call_operand.vmem [shape: f32[1,128], index: 4, kind: input, shape index: {}]
  %s5 = inlined_call_operand.vmem [shape: f32[128,16], index: 5, kind: input, shape index: {}]
  %s6 = inlined_call_operand.vmem [shape: f32[1,16], index: 6, kind: input, shape index: {}]
  %s7 = inlined_call_operand.vmem [shape: bf16[256,16], index: 7, kind: output, shape index: {}]
  %s8 = sld [smem:[#allocation0]]
  $region61: #{contrastive_encoder_forward.1} parent=0
    _
  %s10 = ssub.s32 1, %s8
  %s11 = scalar_select 0, %s10, %s8
  loop: start=0, step=1, limit=4
  $region2: #{contrastive_encoder_forward.1} parent=0 // loop_pre_header
    _
  $region3: #{contrastive_encoder_forward.1} parent=0 // loop_header
    %s13 = sphi 0, %s17
    %p14 = scmp.ge.s32.totalorder %s13, 4
    %s23 = sphi 0, %s25
    %s26 = sphi 0, %s23
    %s27 = sphi 0, %s26
    %s43 = sphi 0, %s27
    %s47 = sphi 0, %s47
    %s49 = sphi 0, %s47
    %s50 = sphi 0, %s49
    %s64 = sphi 0, %s50
    %s68 = sphi 0, %s68
    %s70 = sphi 0, %s68
    %s71 = sphi 0, %s70
    %s85 = sphi 0, %s71
    %s89 = sphi 0, %s89
    %s91 = sphi 0, %s89
    %s92 = sphi 0, %s91
    %s106 = sphi 0, %s92
    %s110 = sphi 0, %s110
    %s112 = sphi 0, %s110
    %s113 = sphi 0, %s112
    %s127 = sphi 0, %s113
    %s131 = sphi 0, %s131
    %s133 = sphi 0, %s131
    %s134 = sphi 0, %s133
    %s148 = sphi 0, %s134
    %s152 = sphi 0, %s152
    %s154 = sphi 0, %s152
    %s155 = sphi 0, %s154
    %s169 = sphi 0, %s155
    %s175 = sphi 0, %s177
    %s178 = sphi 0, %s175
    %s179 = sphi 0, %s178
    %s195 = sphi 0, %s179
  $region4: #{contrastive_encoder_forward.1} parent=0 // loop_header_branch
    %16 = sbr.rel (%p14) target = $region8
  $region5: #{contrastive_encoder_forward.1} parent=0 // loop_body
    %s18 = ssub.s32 %s13, 1
    %s19 = ssub.s32 %s13, 2
    %s20 = sadd.s32 %s13, 1
    %s21 = ssub.s32 %s13, %s20
    %p22 = scmp.eq.s32.totalorder %s21, 0
    %s24 = sadd.s32 %s23, 1
    %s25 = scalar_select %p22, %s23, %s24
    %p28 = pneg %p22
    %p29 = scmp.eq.s32.totalorder %s13, 1
    %p30 = por %p28, %p29
    %p31 = scmp.ne.s32.totalorder %s23, %s26
    %p32 = scmp.eq.s32.totalorder %s13, 0
    %p33 = por %p31, %p32
    %p34 = scmp.ne.s32.totalorder %s23, %s26
    %p35 = scmp.eq.s32.totalorder %s18, 1
    %p36 = por %p34, %p35
    %p37 = scmp.ne.s32.totalorder %s26, %s27
    %p38 = scmp.eq.s32.totalorder %s18, 0
    %p39 = por %p37, %p38
    %p40 = scmp.ne.s32.totalorder %s26, %s27
    %p41 = scmp.eq.s32.totalorder %s19, 1
    %p42 = por %p40, %p41
    %p44 = scmp.ne.s32.totalorder %s27, %s43
    %p45 = scmp.eq.s32.totalorder %s19, 0
    %p46 = por %p44, %p45
    %s48 = sadd.s32 %s47, 1
    %p51 = scmp.eq.s32.totalorder %s13, 1
    %p52 = scmp.ne.s32.totalorder %s47, %s49
    %p53 = scmp.eq.s32.totalorder %s13, 0
    %p54 = por %p52, %p53
    %p55 = scmp.ne.s32.totalorder %s47, %s49
    %p56 = scmp.eq.s32.totalorder %s18, 1
    %p57 = por %p55, %p56
    %p58 = scmp.ne.s32.totalorder %s49, %s50
    %p59 = scmp.eq.s32.totalorder %s18, 0
    %p60 = por %p58, %p59
    %p61 = scmp.ne.s32.totalorder %s49, %s50
    %p62 = scmp.eq.s32.totalorder %s19, 1
    %p63 = por %p61, %p62
    %p65 = scmp.ne.s32.totalorder %s50, %s64
    %p66 = scmp.eq.s32.totalorder %s19, 0
    %p67 = por %p65, %p66
    %s69 = sadd.s32 %s68, 1
    %p72 = scmp.eq.s32.totalorder %s13, 1
    %p73 = scmp.ne.s32.totalorder %s68, %s70
    %p74 = scmp.eq.s32.totalorder %s13, 0
    %p75 = por %p73, %p74
    %p76 = scmp.ne.s32.totalorder %s68, %s70
    %p77 = scmp.eq.s32.totalorder %s18, 1
    %p78 = por %p76, %p77
    %p79 = scmp.ne.s32.totalorder %s70, %s71
    %p80 = scmp.eq.s32.totalorder %s18, 0
    %p81 = por %p79, %p80
    %p82 = scmp.ne.s32.totalorder %s70, %s71
    %p83 = scmp.eq.s32.totalorder %s19, 1
    %p84 = por %p82, %p83
    %p86 = scmp.ne.s32.totalorder %s71, %s85
    %p87 = scmp.eq.s32.totalorder %s19, 0
    %p88 = por %p86, %p87
    %s90 = sadd.s32 %s89, 1
    %p93 = scmp.eq.s32.totalorder %s13, 1
    %p94 = scmp.ne.s32.totalorder %s89, %s91
    %p95 = scmp.eq.s32.totalorder %s13, 0
    %p96 = por %p94, %p95
    %p97 = scmp.ne.s32.totalorder %s89, %s91
    %p98 = scmp.eq.s32.totalorder %s18, 1
    %p99 = por %p97, %p98
    %p100 = scmp.ne.s32.totalorder %s91, %s92
    %p101 = scmp.eq.s32.totalorder %s18, 0
    %p102 = por %p100, %p101
    %p103 = scmp.ne.s32.totalorder %s91, %s92
    %p104 = scmp.eq.s32.totalorder %s19, 1
    %p105 = por %p103, %p104
    %p107 = scmp.ne.s32.totalorder %s92, %s106
    %p108 = scmp.eq.s32.totalorder %s19, 0
    %p109 = por %p107, %p108
    %s111 = sadd.s32 %s110, 1
    %p114 = scmp.eq.s32.totalorder %s13, 1
    %p115 = scmp.ne.s32.totalorder %s110, %s112
    %p116 = scmp.eq.s32.totalorder %s13, 0
    %p117 = por %p115, %p116
    %p118 = scmp.ne.s32.totalorder %s110, %s112
    %p119 = scmp.eq.s32.totalorder %s18, 1
    %p120 = por %p118, %p119
    %p121 = scmp.ne.s32.totalorder %s112, %s113
    %p122 = scmp.eq.s32.totalorder %s18, 0
    %p123 = por %p121, %p122
    %p124 = scmp.ne.s32.totalorder %s112, %s113
    %p125 = scmp.eq.s32.totalorder %s19, 1
    %p126 = por %p124, %p125
    %p128 = scmp.ne.s32.totalorder %s113, %s127
    %p129 = scmp.eq.s32.totalorder %s19, 0
    %p130 = por %p128, %p129
    %s132 = sadd.s32 %s131, 1
    %p135 = scmp.eq.s32.totalorder %s13, 1
    %p136 = scmp.ne.s32.totalorder %s131, %s133
    %p137 = scmp.eq.s32.totalorder %s13, 0
    %p138 = por %p136, %p137
    %p139 = scmp.ne.s32.totalorder %s131, %s133
    %p140 = scmp.eq.s32.totalorder %s18, 1
    %p141 = por %p139, %p140
    %p142 = scmp.ne.s32.totalorder %s133, %s134
    %p143 = scmp.eq.s32.totalorder %s18, 0
    %p144 = por %p142, %p143
    %p145 = scmp.ne.s32.totalorder %s133, %s134
    %p146 = scmp.eq.s32.totalorder %s19, 1
    %p147 = por %p145, %p146
    %p149 = scmp.ne.s32.totalorder %s134, %s148
    %p150 = scmp.eq.s32.totalorder %s19, 0
    %p151 = por %p149, %p150
    %s153 = sadd.s32 %s152, 1
    %p156 = scmp.eq.s32.totalorder %s13, 1
    %p157 = scmp.ne.s32.totalorder %s152, %s154
    %p158 = scmp.eq.s32.totalorder %s13, 0
    %p159 = por %p157, %p158
    %p160 = scmp.ne.s32.totalorder %s152, %s154
    %p161 = scmp.eq.s32.totalorder %s18, 1
    %p162 = por %p160, %p161
    %p163 = scmp.ne.s32.totalorder %s154, %s155
    %p164 = scmp.eq.s32.totalorder %s18, 0
    %p165 = por %p163, %p164
    %p166 = scmp.ne.s32.totalorder %s154, %s155
    %p167 = scmp.eq.s32.totalorder %s19, 1
    %p168 = por %p166, %p167
    %p170 = scmp.ne.s32.totalorder %s155, %s169
    %p171 = scmp.eq.s32.totalorder %s19, 0
    %p172 = por %p170, %p171
    %s173 = ssub.s32 %s13, %s20
    %p174 = scmp.eq.s32.totalorder %s173, 0
    %s176 = sadd.s32 %s175, 1
    %s177 = scalar_select %p174, %s175, %s176
    %p180 = pneg %p174
    %p181 = scmp.eq.s32.totalorder %s13, 1
    %p182 = por %p180, %p181
    %p183 = scmp.ne.s32.totalorder %s175, %s178
    %p184 = scmp.eq.s32.totalorder %s13, 0
    %p185 = por %p183, %p184
    %p186 = scmp.ne.s32.totalorder %s175, %s178
    %p187 = scmp.eq.s32.totalorder %s18, 1
    %p188 = por %p186, %p187
    %p189 = scmp.ne.s32.totalorder %s178, %s179
    %p190 = scmp.eq.s32.totalorder %s18, 0
    %p191 = por %p189, %p190
    %p192 = scmp.ne.s32.totalorder %s178, %s179
    %p193 = scmp.eq.s32.totalorder %s19, 1
    %p194 = por %p192, %p193
    %p196 = scmp.ne.s32.totalorder %s179, %s195
    %p197 = scmp.eq.s32.totalorder %s19, 0
    %p198 = por %p196, %p197
    %p199 = scmp.le.s32.totalorder 1, %s13
    %p200 = scmp.lt.s32.totalorder %s13, 3
    %p201 = pnand %p199, %p200
    %p202 = pneg %p201
    // Predicated region
    $region9: #{contrastive_encoder_forward.1} parent=5 // pred_check
      _
    $region10: #{contrastive_encoder_forward.1} parent=5 // pred_check_branch
      %204 = sbr.rel (%p201) target = $region12
    $region11: #{contrastive_encoder_forward.1} parent=5 // pred_region
      %s205 = ssub.s32 %s13, 1
      // Predicated region
      $region13: #{contrastive_encoder_forward.1} parent=11 // pred_check
        %p206 = pneg %p60
      $region14: #{contrastive_encoder_forward.1} parent=11 // pred_check_branch
        %208 = sbr.rel (%p206) target = $region16
      $region15: #{contrastive_encoder_forward.1} parent=11 // pred_region
        _
      $region16: #{contrastive_encoder_forward.1} parent=11 // pred_fallthru
        _
      // Predicated region
      $region17: #{contrastive_encoder_forward.1} parent=11 // pred_check
        %p209 = pneg %p81
      $region18: #{contrastive_encoder_forward.1} parent=11 // pred_check_branch
        %211 = sbr.rel (%p209) target = $region20
      $region19: #{contrastive_encoder_forward.1} parent=11 // pred_region
        _
      $region20: #{contrastive_encoder_forward.1} parent=11 // pred_fallthru
        _
      // Predicated region
      $region21: #{contrastive_encoder_forward.1} parent=11 // pred_check
        %p212 = pneg %p102
      $region22: #{contrastive_encoder_forward.1} parent=11 // pred_check_branch
        %214 = sbr.rel (%p212) target = $region24
      $region23: #{contrastive_encoder_forward.1} parent=11 // pred_region
        _
      $region24: #{contrastive_encoder_forward.1} parent=11 // pred_fallthru
        _
      // Predicated region
      $region25: #{contrastive_encoder_forward.1} parent=11 // pred_check
        %p215 = pneg %p123
      $region26: #{contrastive_encoder_forward.1} parent=11 // pred_check_branch
        %217 = sbr.rel (%p215) target = $region28
      $region27: #{contrastive_encoder_forward.1} parent=11 // pred_region
        _
      $region28: #{contrastive_encoder_forward.1} parent=11 // pred_fallthru
        _
      // Predicated region
      $region29: #{contrastive_encoder_forward.1} parent=11 // pred_check
        %p218 = pneg %p144
      $region30: #{contrastive_encoder_forward.1} parent=11 // pred_check_branch
        %220 = sbr.rel (%p218) target = $region32
      $region31: #{contrastive_encoder_forward.1} parent=11 // pred_region
        _
      $region32: #{contrastive_encoder_forward.1} parent=11 // pred_fallthru
        _
      // Predicated region
      $region33: #{contrastive_encoder_forward.1} parent=11 // pred_check
        %p221 = pneg %p165
      $region34: #{contrastive_encoder_forward.1} parent=11 // pred_check_branch
        %223 = sbr.rel (%p221) target = $region36
      $region35: #{contrastive_encoder_forward.1} parent=11 // pred_region
        _
      $region36: #{contrastive_encoder_forward.1} parent=11 // pred_fallthru
        _
    $region12: #{contrastive_encoder_forward.1} parent=5 // pred_fallthru
      _
    %p224 = scmp.lt.s32.totalorder %s13, 2
    // Predicated region
    $region37: #{contrastive_encoder_forward.1} parent=5 // pred_check
      %p225 = pneg %p224
    $region38: #{contrastive_encoder_forward.1} parent=5 // pred_check_branch
      %227 = sbr.rel (%p225) target = $region40
    $region39: #{contrastive_encoder_forward.1} parent=5 // pred_region
      // Predicated region
      $region41: #{contrastive_encoder_forward.1} parent=39 // pred_check
        %p228 = pneg %p33
      $region42: #{contrastive_encoder_forward.1} parent=39 // pred_check_branch
        %230 = sbr.rel (%p228) target = $region44
      $region43: #{contrastive_encoder_forward.1} parent=39 // pred_region
        %s231 = smul.u32 16, %s13
        %p232 = scmp.lt.s32.totalorder %s231, 31
        %s233 = scalar_select %p232, %s231, 31
        %s234 = smul.addr %s233, 8
        %s235 = scalar_lea.vmem %s0, %s234
        %s236 = smul.u32 16, %s13
      $region44: #{contrastive_encoder_forward.1} parent=39 // pred_fallthru
        _
    $region40: #{contrastive_encoder_forward.1} parent=5 // pred_fallthru
      _
    %p237 = scmp.le.s32.totalorder 1, %s13
    %p238 = scmp.lt.s32.totalorder %s13, 3
    %p239 = pnand %p237, %p238
    %p240 = pneg %p239
    // Predicated region
    $region45: #{contrastive_encoder_forward.1} parent=5 // pred_check
      _
    $region46: #{contrastive_encoder_forward.1} parent=5 // pred_check_branch
      %242 = sbr.rel (%p239) target = $region48
    $region47: #{contrastive_encoder_forward.1} parent=5 // pred_region
      %s243 = ssub.s32 %s13, 1
      %s244 = smul.u32 16, %s18
      %p245 = scmp.lt.s32.totalorder %s244, 31
      %s246 = scalar_select %p245, %s244, 31
      %s247 = smul.addr %s246, 8
      %s248 = scalar_lea.vmem %s0, %s247
      %p249 = pneg %p39
      %p250 = pneg %p36
      %p251 = pneg %p60
      %p252 = pneg %p57
      %p253 = pneg %p81
      %p254 = pneg %p78
      %p255 = pneg %p102
      %p256 = pneg %p99
      %p257 = pneg %p123
      %p258 = pneg %p120
      %p259 = pneg %p144
      %p260 = pneg %p141
      %p261 = pneg %p165
      %p262 = pneg %p162
      %p263 = pneg %p191
      %p264 = pneg %p188
      %s265 = smul.u32 16, %s18
      %p266 = scmp.lt.s32.totalorder %s265, 31
      %s267 = scalar_select %p266, %s265, 31
      %s268 = smul.addr %s267, 4
      %s269 = scalar_lea.vmem %s7, %s268
      %s270 = smul.u32 16, %s18
      %p271 = scmp.lt.s32.totalorder %s270, 31
      %s272 = scalar_select %p271, %s270, 31
      %s273 = smul.addr %s272, 8
      %s274 = scalar_lea.vmem %s0, %s273
      %s275 = smul.u32 16, %s18
      %s276 = smul.u32 16, %s18
      %p277 = scmp.lt.s32.totalorder %s276, 31
      %s278 = scalar_select %p277, %s276, 31
      %s279 = smul.addr %s278, 4
      %s280 = scalar_lea.vmem %s7, %s279
      %s281 = smul.u32 16, %s18
      %v283 = vld [vmem:[%s274] sm:$0xff]
      %v284 = vld [vmem:[%s274 + $0x8] sm:$0xff]
      %v285 = vld [vmem:[%s274 + $0x10] sm:$0xff]
      %v286 = vld [vmem:[%s274 + $0x18] sm:$0xff]
      %v287 = vld [vmem:[%s274 + $0x20] sm:$0xff]
      %v288 = vld [vmem:[%s274 + $0x28] sm:$0xff]
      %v289 = vld [vmem:[%s274 + $0x30] sm:$0xff]
      %v290 = vld [vmem:[%s274 + $0x38] sm:$0xff]
      %v291 = vld [vmem:[%s274 + $0x40] sm:$0xff]
      %v292 = vld [vmem:[%s274 + $0x48] sm:$0xff]
      %v293 = vld [vmem:[%s274 + $0x50] sm:$0xff]
      %v294 = vld [vmem:[%s274 + $0x58] sm:$0xff]
      %v295 = vld [vmem:[%s274 + $0x60] sm:$0xff]
      %v296 = vld [vmem:[%s274 + $0x68] sm:$0xff]
      %v297 = vld [vmem:[%s274 + $0x70] sm:$0xff]
      %v298 = vld [vmem:[%s274 + $0x78] sm:$0xff]
      %v299 = vpack.c.bf16 %v284, %v283
      %v300 = vpack.c.bf16 %v286, %v285
      %v301 = vpack.c.bf16 %v288, %v287
      %v302 = vpack.c.bf16 %v290, %v289
      %v303 = vpack.c.bf16 %v292, %v291
      %v304 = vpack.c.bf16 %v294, %v293
      %v305 = vpack.c.bf16 %v296, %v295
      %v306 = vpack.c.bf16 %v298, %v297
      %v307 = vld [vmem:[%s1] sm:$0xff]
      %v308 = vld [vmem:[%s1 + $0x8] sm:$0xff]
      %v309 = vld [vmem:[%s1 + $0x10] sm:$0xff]
      %v310 = vld [vmem:[%s1 + $0x18] sm:$0xff]
      %v311 = vpack.c.bf16 %v308, %v307
      %v312 = vpack.c.bf16 %v310, %v309
      %v313 = vld [vmem:[%s3] sm:$0xff]
      %v314 = vld [vmem:[%s3 + $0x8] sm:$0xff]
      %v315 = vld [vmem:[%s3 + $0x10] sm:$0xff]
      %v316 = vld [vmem:[%s3 + $0x18] sm:$0xff]
      %v317 = vld [vmem:[%s3 + $0x20] sm:$0xff]
      %v318 = vld [vmem:[%s3 + $0x28] sm:$0xff]
      %v319 = vld [vmem:[%s3 + $0x30] sm:$0xff]
      %v320 = vld [vmem:[%s3 + $0x38] sm:$0xff]
      %v321 = vld [vmem:[%s3 + $0x40] sm:$0xff]
      %v322 = vld [vmem:[%s3 + $0x48] sm:$0xff]
      %v323 = vld [vmem:[%s3 + $0x50] sm:$0xff]
      %v324 = vld [vmem:[%s3 + $0x58] sm:$0xff]
      %v325 = vld [vmem:[%s3 + $0x60] sm:$0xff]
      %v326 = vld [vmem:[%s3 + $0x68] sm:$0xff]
      %v327 = vld [vmem:[%s3 + $0x70] sm:$0xff]
      %v328 = vld [vmem:[%s3 + $0x78] sm:$0xff]
      %v329 = vpack.c.bf16 %v314, %v313
      %v330 = vpack.c.bf16 %v316, %v315
      %v331 = vpack.c.bf16 %v318, %v317
      %v332 = vpack.c.bf16 %v320, %v319
      %v333 = vpack.c.bf16 %v322, %v321
      %v334 = vpack.c.bf16 %v324, %v323
      %v335 = vpack.c.bf16 %v326, %v325
      %v336 = vpack.c.bf16 %v328, %v327
      %v337 = vld [vmem:[%s5] sm:$0xff]
      %v338 = vld [vmem:[%s5 + $0x8] sm:$0xff]
      %v339 = vld [vmem:[%s5 + $0x10] sm:$0xff]
      %v340 = vld [vmem:[%s5 + $0x18] sm:$0xff]
      %v341 = vld [vmem:[%s5 + $0x20] sm:$0xff]
      %v342 = vld [vmem:[%s5 + $0x28] sm:$0xff]
      %v343 = vld [vmem:[%s5 + $0x30] sm:$0xff]
      %v344 = vld [vmem:[%s5 + $0x38] sm:$0xff]
      %v345 = vld [vmem:[%s5 + $0x40] sm:$0xff]
      %v346 = vld [vmem:[%s5 + $0x48] sm:$0xff]
      %v347 = vld [vmem:[%s5 + $0x50] sm:$0xff]
      %v348 = vld [vmem:[%s5 + $0x58] sm:$0xff]
      %v349 = vld [vmem:[%s5 + $0x60] sm:$0xff]
      %v350 = vld [vmem:[%s5 + $0x68] sm:$0xff]
      %v351 = vld [vmem:[%s5 + $0x70] sm:$0xff]
      %v352 = vld [vmem:[%s5 + $0x78] sm:$0xff]
      %v353 = vpack.c.bf16 %v338, %v337
      %v354 = vpack.c.bf16 %v340, %v339
      %v355 = vpack.c.bf16 %v342, %v341
      %v356 = vpack.c.bf16 %v344, %v343
      %v357 = vpack.c.bf16 %v346, %v345
      %v358 = vpack.c.bf16 %v348, %v347
      %v359 = vpack.c.bf16 %v350, %v349
      %v360 = vpack.c.bf16 %v352, %v351
      %v361 = vld [vmem:[%s2] sm:$0x1]
      %v363 = vlaneseq
      %v364 = vshrl.u32 %v363, 7
      %v365 = vsub.s32 0, %v364
      %v366 = vrot.slane %v361, %v365
      %vm368 = vcmask 261120
      %v370 = vsel %vm368, %v299, 0
      %v373 = vsel %vm368, %v300, 0
      %v376 = vsel %vm368, %v301, 0
      %v379 = vsel %vm368, %v302, 0
      %v382 = vsel %vm368, %v303, 0
      %v385 = vsel %vm368, %v304, 0
      %v388 = vsel %vm368, %v305, 0
      %v391 = vsel %vm368, %v306, 0
      %393 = vmatprep.subr.bf16.mxu0 0
      %394 = vmatpush1.bf16.msra.mxu0 %v311
      %395 = vmatprep.subr.bf16.mxu0 0
      %396 = vmatpush1.bf16.msra.mxu0 %v312
      %397 = vmatprep.subr.bf16.mxu0 0
      %398 = vmatpush1.bf16.msra.mxu0 0
      %399 = vmatprep.subr.bf16.mxu0 0
      %400 = vmatpush1.bf16.msra.mxu0 0
      %401 = vmatprep.subr.bf16.mxu0 0
      %402 = vmatpush1.bf16.msra.mxu0 0
      %403 = vmatprep.subr.bf16.mxu0 0
      %404 = vmatpush1.bf16.msra.mxu0 0
      %405 = vmatprep.subr.bf16.mxu0 0
      %406 = vmatpush1.bf16.msra.mxu0 0
      %407 = vmatprep.subr.bf16.mxu0 0
      %408 = vmatpush1.bf16.msra.mxu0 0
      %409 = vmatprep.subr.bf16.mxu0 0
      %410 = vmatpush1.bf16.msra.mxu0 0
      %411 = vmatprep.subr.bf16.mxu0 0
      %412 = vmatpush1.bf16.msra.mxu0 0
      %413 = vmatprep.subr.bf16.mxu0 0
      %414 = vmatpush1.bf16.msra.mxu0 0
      %415 = vmatprep.subr.bf16.mxu0 0
      %416 = vmatpush1.bf16.msra.mxu0 0
      %417 = vmatprep.subr.bf16.mxu0 0
      %418 = vmatpush1.bf16.msra.mxu0 0
      %419 = vmatprep.subr.bf16.mxu0 0
      %420 = vmatpush1.bf16.msra.mxu0 0
      %421 = vmatprep.subr.bf16.mxu0 0
      %422 = vmatpush1.bf16.msra.mxu0 0
      %423 = vmatprep.subr.bf16.mxu0 0
      %424 = vmatpush1.bf16.msra.mxu0 0
      %425 = vmatprep.mubr.bf16.mxu0 0
      %426 = vmatmul.mubr.bf16.gmra.mrb[0].mxu0 %v370
      %v427 = vpop.f32.mrb[0].mxu0
      %v428 = vadd.f32 %v366, %v427
      %v429 = vpop.f32.mrb[0].mxu0
      %v430 = vpop.f32.mrb[0].mxu0
      %v431 = vadd.f32 %v366, %v430
      %v432 = vpop.f32.mrb[0].mxu0
      %433 = vmatprep.mubr.bf16.mxu0 0
      %434 = vmatmul.mubr.bf16.gmra.mrb[0].mxu0 %v373
      %v435 = vpop.f32.mrb[0].mxu0
      %v436 = vadd.f32 %v366, %v435
      %v437 = vpop.f32.mrb[0].mxu0
      %v438 = vpop.f32.mrb[0].mxu0
      %v439 = vadd.f32 %v366, %v438
      %v440 = vpop.f32.mrb[0].mxu0
      %441 = vmatprep.mubr.bf16.mxu0 0
      %442 = vmatmul.mubr.bf16.gmra.mrb[0].mxu0 %v376
      %v443 = vpop.f32.mrb[0].mxu0
      %v444 = vadd.f32 %v366, %v443
      %v445 = vpop.f32.mrb[0].mxu0
      %v446 = vpop.f32.mrb[0].mxu0
      %v447 = vadd.f32 %v366, %v446
      %v448 = vpop.f32.mrb[0].mxu0
      %449 = vmatprep.mubr.bf16.mxu0 0
      %450 = vmatmul.mubr.bf16.gmra.mrb[0].mxu0 %v379
      %v451 = vpop.f32.mrb[0].mxu0
      %v452 = vadd.f32 %v366, %v451
      %v453 = vpop.f32.mrb[0].mxu0
      %v454 = vpop.f32.mrb[0].mxu0
      %v455 = vadd.f32 %v366, %v454
      %v456 = vpop.f32.mrb[0].mxu0
      %457 = vmatprep.mubr.bf16.mxu0 0
      %458 = vmatmul.mubr.bf16.gmra.mrb[0].mxu0 %v382
      %v459 = vpop.f32.mrb[0].mxu0
      %v460 = vadd.f32 %v366, %v459
      %v461 = vpop.f32.mrb[0].mxu0
      %v462 = vpop.f32.mrb[0].mxu0
      %v463 = vadd.f32 %v366, %v462
      %v464 = vpop.f32.mrb[0].mxu0
      %465 = vmatprep.mubr.bf16.mxu0 0
      %466 = vmatmul.mubr.bf16.gmra.mrb[0].mxu0 %v385
      %v467 = vpop.f32.mrb[0].mxu0
      %v468 = vadd.f32 %v366, %v467
      %v469 = vpop.f32.mrb[0].mxu0
      %v470 = vpop.f32.mrb[0].mxu0
      %v471 = vadd.f32 %v366, %v470
      %v472 = vpop.f32.mrb[0].mxu0
      %473 = vmatprep.mubr.bf16.mxu0 0
      %474 = vmatmul.mubr.bf16.gmra.mrb[0].mxu0 %v388
      %v475 = vpop.f32.mrb[0].mxu0
      %v476 = vadd.f32 %v366, %v475
      %v477 = vpop.f32.mrb[0].mxu0
      %v478 = vpop.f32.mrb[0].mxu0
      %v479 = vadd.f32 %v366, %v478
      %v480 = vpop.f32.mrb[0].mxu0
      %481 = vmatprep.mubr.bf16.mxu0 0
      %482 = vmatmul.mubr.bf16.gmra.mrb[0].mxu0 %v391
      %v483 = vpop.f32.mrb[0].mxu0
      %v484 = vadd.f32 %v366, %v483
      %v485 = vpop.f32.mrb[0].mxu0
      %v486 = vpop.f32.mrb[0].mxu0
      %v487 = vadd.f32 %v366, %v486
      %v488 = vpop.f32.mrb[0].mxu0
      %489 = vdwg.mxu0
      %v490 = vmax.f32 %v428, 0.0
      %v491 = vmax.f32 %v431, 0.0
      %v492 = vmax.f32 %v436, 0.0
      %v493 = vmax.f32 %v439, 0.0
      %v494 = vmax.f32 %v444, 0.0
      %v495 = vmax.f32 %v447, 0.0
      %v496 = vmax.f32 %v452, 0.0
      %v497 = vmax.f32 %v455, 0.0
      %v498 = vmax.f32 %v460, 0.0
      %v499 = vmax.f32 %v463, 0.0
      %v500 = vmax.f32 %v468, 0.0
      %v501 = vmax.f32 %v471, 0.0
      %v502 = vmax.f32 %v476, 0.0
      %v503 = vmax.f32 %v479, 0.0
      %v504 = vmax.f32 %v484, 0.0
      %v505 = vmax.f32 %v487, 0.0
      %v506 = vpack.c.bf16 %v491, %v490
      %v507 = vpack.c.bf16 %v493, %v492
      %v508 = vpack.c.bf16 %v495, %v494
      %v509 = vpack.c.bf16 %v497, %v496
      %v510 = vpack.c.bf16 %v499, %v498
      %v511 = vpack.c.bf16 %v501, %v500
      %v512 = vpack.c.bf16 %v503, %v502
      %v513 = vpack.c.bf16 %v505, %v504
      %v514 = vld [vmem:[%s4] sm:$0x1]
      %v516 = vlaneseq
      %v517 = vshrl.u32 %v516, 7
      %v518 = vsub.s32 0, %v517
      %v519 = vrot.slane %v514, %v518
      %521 = vmatprep.subr.bf16.mxu0 0
      %522 = vmatpush1.bf16.msra.mxu0 %v329
      %523 = vmatprep.subr.bf16.mxu0 0
      %524 = vmatpush1.bf16.msra.mxu0 %v330
      %525 = vmatprep.subr.bf16.mxu0 0
      %526 = vmatpush1.bf16.msra.mxu0 %v331
      %527 = vmatprep.subr.bf16.mxu0 0
      %528 = vmatpush1.bf16.msra.mxu0 %v332
      %529 = vmatprep.subr.bf16.mxu0 0
      %530 = vmatpush1.bf16.msra.mxu0 %v333
      %531 = vmatprep.subr.bf16.mxu0 0
      %532 = vmatpush1.bf16.msra.mxu0 %v334
      %533 = vmatprep.subr.bf16.mxu0 0
      %534 = vmatpush1.bf16.msra.mxu0 %v335
      %535 = vmatprep.subr.bf16.mxu0 0
      %536 = vmatpush1.bf16.msra.mxu0 %v336
      %537 = vmatprep.subr.bf16.mxu0 0
      %538 = vmatpush1.bf16.msra.mxu0 0
      %539 = vmatprep.subr.bf16.mxu0 0
      %540 = vmatpush1.bf16.msra.mxu0 0
      %541 = vmatprep.subr.bf16.mxu0 0
      %542 = vmatpush1.bf16.msra.mxu0 0
      %543 = vmatprep.subr.bf16.mxu0 0
      %544 = vmatpush1.bf16.msra.mxu0 0
      %545 = vmatprep.subr.bf16.mxu0 0
      %546 = vmatpush1.bf16.msra.mxu0 0
      %547 = vmatprep.subr.bf16.mxu0 0
      %548 = vmatpush1.bf16.msra.mxu0 0
      %549 = vmatprep.subr.bf16.mxu0 0
      %550 = vmatpush1.bf16.msra.mxu0 0
      %551 = vmatprep.subr.bf16.mxu0 0
      %552 = vmatpush1.bf16.msra.mxu0 0
      %553 = vmatprep.mubr.bf16.mxu0 0
      %554 = vmatmul.mubr.bf16.gmra.mrb[0].mxu0 %v506
      %v555 = vpop.f32.mrb[0].mxu0
      %v556 = vadd.f32 %v519, %v555
      %v557 = vpop.f32.mrb[0].mxu0
      %v558 = vpop.f32.mrb[0].mxu0
      %v559 = vadd.f32 %v519, %v558
      %v560 = vpop.f32.mrb[0].mxu0
      %561 = vmatprep.mubr.bf16.mxu0 0
      %562 = vmatmul.mubr.bf16.gmra.mrb[0].mxu0 %v507
      %v563 = vpop.f32.mrb[0].mxu0
      %v564 = vadd.f32 %v519, %v563
      %v565 = vpop.f32.mrb[0].mxu0
      %v566 = vpop.f32.mrb[0].mxu0
      %v567 = vadd.f32 %v519, %v566
      %v568 = vpop.f32.mrb[0].mxu0
      %569 = vmatprep.mubr.bf16.mxu0 0
      %570 = vmatmul.mubr.bf16.gmra.mrb[0].mxu0 %v508
      %v571 = vpop.f32.mrb[0].mxu0
      %v572 = vadd.f32 %v519, %v571
      %v573 = vpop.f32.mrb[0].mxu0
      %v574 = vpop.f32.mrb[0].mxu0
      %v575 = vadd.f32 %v519, %v574
      %v576 = vpop.f32.mrb[0].mxu0
      %577 = vmatprep.mubr.bf16.mxu0 0
      %578 = vmatmul.mubr.bf16.gmra.mrb[0].mxu0 %v509
      %v579 = vpop.f32.mrb[0].mxu0
      %v580 = vadd.f32 %v519, %v579
      %v581 = vpop.f32.mrb[0].mxu0
      %v582 = vpop.f32.mrb[0].mxu0
      %v583 = vadd.f32 %v519, %v582
      %v584 = vpop.f32.mrb[0].mxu0
      %585 = vmatprep.mubr.bf16.mxu0 0
      %586 = vmatmul.mubr.bf16.gmra.mrb[0].mxu0 %v510
      %v587 = vpop.f32.mrb[0].mxu0
      %v588 = vadd.f32 %v519, %v587
      %v589 = vpop.f32.mrb[0].mxu0
      %v590 = vpop.f32.mrb[0].mxu0
      %v591 = vadd.f32 %v519, %v590
      %v592 = vpop.f32.mrb[0].mxu0
      %593 = vmatprep.mubr.bf16.mxu0 0
      %594 = vmatmul.mubr.bf16.gmra.mrb[0].mxu0 %v511
      %v595 = vpop.f32.mrb[0].mxu0
      %v596 = vadd.f32 %v519, %v595
      %v597 = vpop.f32.mrb[0].mxu0
      %v598 = vpop.f32.mrb[0].mxu0
      %v599 = vadd.f32 %v519, %v598
      %v600 = vpop.f32.mrb[0].mxu0
      %601 = vmatprep.mubr.bf16.mxu0 0
      %602 = vmatmul.mubr.bf16.gmra.mrb[0].mxu0 %v512
      %v603 = vpop.f32.mrb[0].mxu0
      %v604 = vadd.f32 %v519, %v603
      %v605 = vpop.f32.mrb[0].mxu0
      %v606 = vpop.f32.mrb[0].mxu0
      %v607 = vadd.f32 %v519, %v606
      %v608 = vpop.f32.mrb[0].mxu0
      %609 = vmatprep.mubr.bf16.mxu0 0
      %610 = vmatmul.mubr.bf16.gmra.mrb[0].mxu0 %v513
      %v611 = vpop.f32.mrb[0].mxu0
      %v612 = vadd.f32 %v519, %v611
      %v613 = vpop.f32.mrb[0].mxu0
      %v614 = vpop.f32.mrb[0].mxu0
      %v615 = vadd.f32 %v519, %v614
      %v616 = vpop.f32.mrb[0].mxu0
      %617 = vdwg.mxu0
      %v618 = vmax.f32 %v556, 0.0
      %v619 = vmax.f32 %v559, 0.0
      %v620 = vmax.f32 %v564, 0.0
      %v621 = vmax.f32 %v567, 0.0
      %v622 = vmax.f32 %v572, 0.0
      %v623 = vmax.f32 %v575, 0.0
      %v624 = vmax.f32 %v580, 0.0
      %v625 = vmax.f32 %v583, 0.0
      %v626 = vmax.f32 %v588, 0.0
      %v627 = vmax.f32 %v591, 0.0
      %v628 = vmax.f32 %v596, 0.0
      %v629 = vmax.f32 %v599, 0.0
      %v630 = vmax.f32 %v604, 0.0
      %v631 = vmax.f32 %v607, 0.0
      %v632 = vmax.f32 %v612, 0.0
      %v633 = vmax.f32 %v615, 0.0
      %v634 = vpack.c.bf16 %v619, %v618
      %v635 = vpack.c.bf16 %v621, %v620
      %v636 = vpack.c.bf16 %v623, %v622
      %v637 = vpack.c.bf16 %v625, %v624
      %v638 = vpack.c.bf16 %v627, %v626
      %v639 = vpack.c.bf16 %v629, %v628
      %v640 = vpack.c.bf16 %v631, %v630
      %v641 = vpack.c.bf16 %v633, %v632
      %v642 = vld [vmem:[%s6] sm:$0x1]
      %v644 = vlaneseq
      %v645 = vshrl.u32 %v644, 7
      %v646 = vsub.s32 0, %v645
      %v647 = vrot.slane %v642, %v646
      %649 = vmatprep.subr.bf16.mxu0 0
      %650 = vmatpush1.bf16.msra.mxu0 %v353
      %651 = vmatprep.subr.bf16.mxu0 0
      %652 = vmatpush1.bf16.msra.mxu0 %v354
      %653 = vmatprep.subr.bf16.mxu0 0
      %654 = vmatpush1.bf16.msra.mxu0 %v355
      %655 = vmatprep.subr.bf16.mxu0 0
      %656 = vmatpush1.bf16.msra.mxu0 %v356
      %657 = vmatprep.subr.bf16.mxu0 0
      %658 = vmatpush1.bf16.msra.mxu0 %v357
      %659 = vmatprep.subr.bf16.mxu0 0
      %660 = vmatpush1.bf16.msra.mxu0 %v358
      %661 = vmatprep.subr.bf16.mxu0 0
      %662 = vmatpush1.bf16.msra.mxu0 %v359
      %663 = vmatprep.subr.bf16.mxu0 0
      %664 = vmatpush1.bf16.msra.mxu0 %v360
      %665 = vmatprep.subr.bf16.mxu0 0
      %666 = vmatpush1.bf16.msra.mxu0 0
      %667 = vmatprep.subr.bf16.mxu0 0
      %668 = vmatpush1.bf16.msra.mxu0 0
      %669 = vmatprep.subr.bf16.mxu0 0
      %670 = vmatpush1.bf16.msra.mxu0 0
      %671 = vmatprep.subr.bf16.mxu0 0
      %672 = vmatpush1.bf16.msra.mxu0 0
      %673 = vmatprep.subr.bf16.mxu0 0
      %674 = vmatpush1.bf16.msra.mxu0 0
      %675 = vmatprep.subr.bf16.mxu0 0
      %676 = vmatpush1.bf16.msra.mxu0 0
      %677 = vmatprep.subr.bf16.mxu0 0
      %678 = vmatpush1.bf16.msra.mxu0 0
      %679 = vmatprep.subr.bf16.mxu0 0
      %680 = vmatpush1.bf16.msra.mxu0 0
      %681 = vmatprep.mubr.bf16.mxu0 0
      %682 = vmatmul.mubr.bf16.gmra.mrb[0].mxu0 %v634
      %v683 = vpop.f32.mrb[0].mxu0
      %v684 = vadd.f32 %v647, %v683
      %v685 = vpop.f32.mrb[0].mxu0
      %v686 = vpop.f32.mrb[0].mxu0
      %v687 = vadd.f32 %v647, %v686
      %v688 = vpop.f32.mrb[0].mxu0
      %689 = vmatprep.mubr.bf16.mxu0 0
      %690 = vmatmul.mubr.bf16.gmra.mrb[0].mxu0 %v635
      %v691 = vpop.f32.mrb[0].mxu0
      %v692 = vadd.f32 %v647, %v691
      %v693 = vpop.f32.mrb[0].mxu0
      %v694 = vpop.f32.mrb[0].mxu0
      %v695 = vadd.f32 %v647, %v694
      %v696 = vpop.f32.mrb[0].mxu0
      %697 = vmatprep.mubr.bf16.mxu0 0
      %698 = vmatmul.mubr.bf16.gmra.mrb[0].mxu0 %v636
      %v699 = vpop.f32.mrb[0].mxu0
      %v700 = vadd.f32 %v647, %v699
      %v701 = vpop.f32.mrb[0].mxu0
      %v702 = vpop.f32.mrb[0].mxu0
      %v703 = vadd.f32 %v647, %v702
      %v704 = vpop.f32.mrb[0].mxu0
      %705 = vmatprep.mubr.bf16.mxu0 0
      %706 = vmatmul.mubr.bf16.gmra.mrb[0].mxu0 %v637
      %v707 = vpop.f32.mrb[0].mxu0
      %v708 = vadd.f32 %v647, %v707
      %v709 = vpop.f32.mrb[0].mxu0
      %v710 = vpop.f32.mrb[0].mxu0
      %v711 = vadd.f32 %v647, %v710
      %v712 = vpop.f32.mrb[0].mxu0
      %713 = vmatprep.mubr.bf16.mxu0 0
      %714 = vmatmul.mubr.bf16.gmra.mrb[0].mxu0 %v638
      %v715 = vpop.f32.mrb[0].mxu0
      %v716 = vadd.f32 %v647, %v715
      %v717 = vpop.f32.mrb[0].mxu0
      %v718 = vpop.f32.mrb[0].mxu0
      %v719 = vadd.f32 %v647, %v718
      %v720 = vpop.f32.mrb[0].mxu0
      %721 = vmatprep.mubr.bf16.mxu0 0
      %722 = vmatmul.mubr.bf16.gmra.mrb[0].mxu0 %v639
      %v723 = vpop.f32.mrb[0].mxu0
      %v724 = vadd.f32 %v647, %v723
      %v725 = vpop.f32.mrb[0].mxu0
      %v726 = vpop.f32.mrb[0].mxu0
      %v727 = vadd.f32 %v647, %v726
      %v728 = vpop.f32.mrb[0].mxu0
      %729 = vmatprep.mubr.bf16.mxu0 0
      %730 = vmatmul.mubr.bf16.gmra.mrb[0].mxu0 %v640
      %v731 = vpop.f32.mrb[0].mxu0
      %v732 = vadd.f32 %v647, %v731
      %v733 = vpop.f32.mrb[0].mxu0
      %v734 = vpop.f32.mrb[0].mxu0
      %v735 = vadd.f32 %v647, %v734
      %v736 = vpop.f32.mrb[0].mxu0
      %737 = vmatprep.mubr.bf16.mxu0 0
      %738 = vmatmul.mubr.bf16.gmra.mrb[0].mxu0 %v641
      %v739 = vpop.f32.mrb[0].mxu0
      %v740 = vadd.f32 %v647, %v739
      %v741 = vpop.f32.mrb[0].mxu0
      %v742 = vpop.f32.mrb[0].mxu0
      %v743 = vadd.f32 %v647, %v742
      %v744 = vpop.f32.mrb[0].mxu0
      %745 = vdwg.mxu0
      %v746 = vpack.c.bf16 %v687, %v684
      %v747 = vpack.c.bf16 %v695, %v692
      %v748 = vpack.c.bf16 %v703, %v700
      %v749 = vpack.c.bf16 %v711, %v708
      %v750 = vpack.c.bf16 %v719, %v716
      %v751 = vpack.c.bf16 %v727, %v724
      %v752 = vpack.c.bf16 %v735, %v732
      %v753 = vpack.c.bf16 %v743, %v740
      %v762 = vunpack.c.l.b16 %v746
      %v763 = vunpack.c.h.b16 %v746
      %v764 = vunpack.c.l.b16 %v747
      %v765 = vunpack.c.h.b16 %v747
      %v766 = vunpack.c.l.b16 %v748
      %v767 = vunpack.c.h.b16 %v748
      %v768 = vunpack.c.l.b16 %v749
      %v769 = vunpack.c.h.b16 %v749
      %v770 = vunpack.c.l.b16 %v750
      %v771 = vunpack.c.h.b16 %v750
      %v772 = vunpack.c.l.b16 %v751
      %v773 = vunpack.c.h.b16 %v751
      %v774 = vunpack.c.l.b16 %v752
      %v775 = vunpack.c.h.b16 %v752
      %v776 = vunpack.c.l.b16 %v753
      %v777 = vunpack.c.h.b16 %v753
      %v778 = vpack.c.b16 %v762, %v762
      %v779 = vpack.c.b16 %v763, %v763
      %v780 = vpack.c.b16 %v764, %v764
      %v781 = vpack.c.b16 %v765, %v765
      %v782 = vpack.c.b16 %v766, %v766
      %v783 = vpack.c.b16 %v767, %v767
      %v784 = vpack.c.b16 %v768, %v768
      %v785 = vpack.c.b16 %v769, %v769
      %v786 = vpack.c.b16 %v770, %v770
      %v787 = vpack.c.b16 %v771, %v771
      %v788 = vpack.c.b16 %v772, %v772
      %v789 = vpack.c.b16 %v773, %v773
      %v790 = vpack.c.b16 %v774, %v774
      %v791 = vpack.c.b16 %v775, %v775
      %v792 = vpack.c.b16 %v776, %v776
      %v793 = vpack.c.b16 %v777, %v777
      %vm810 = vcmask 125952
      %811 = vst.msk [vmem:[%s280] sm:$0xf] %vm810, %v778
      %812 = vst.msk [vmem:[%s280 + $0x4] sm:$0xf] %vm810, %v779
      %813 = vst.msk [vmem:[%s280 + $0x8] sm:$0xf] %vm810, %v780
      %814 = vst.msk [vmem:[%s280 + $0xc] sm:$0xf] %vm810, %v781
      %815 = vst.msk [vmem:[%s280 + $0x10] sm:$0xf] %vm810, %v782
      %816 = vst.msk [vmem:[%s280 + $0x14] sm:$0xf] %vm810, %v783
      %817 = vst.msk [vmem:[%s280 + $0x18] sm:$0xf] %vm810, %v784
      %818 = vst.msk [vmem:[%s280 + $0x1c] sm:$0xf] %vm810, %v785
      %819 = vst.msk [vmem:[%s280 + $0x20] sm:$0xf] %vm810, %v786
      %820 = vst.msk [vmem:[%s280 + $0x24] sm:$0xf] %vm810, %v787
      %821 = vst.msk [vmem:[%s280 + $0x28] sm:$0xf] %vm810, %v788
      %822 = vst.msk [vmem:[%s280 + $0x2c] sm:$0xf] %vm810, %v789
      %823 = vst.msk [vmem:[%s280 + $0x30] sm:$0xf] %vm810, %v790
      %824 = vst.msk [vmem:[%s280 + $0x34] sm:$0xf] %vm810, %v791
      %825 = vst.msk [vmem:[%s280 + $0x38] sm:$0xf] %vm810, %v792
      %826 = vst.msk [vmem:[%s280 + $0x3c] sm:$0xf] %vm810, %v793
      %s827 = smul.u32 16, %s18
      %p828 = scmp.lt.s32.totalorder %s827, 31
      %s829 = scalar_select %p828, %s827, 31
      %s830 = smul.addr %s829, 4
      %s831 = scalar_lea.vmem %s7, %s830
      // Predicated region
      $region49: #{contrastive_encoder_forward.1} parent=47 // pred_check
        %p832 = pneg %p188
      $region50: #{contrastive_encoder_forward.1} parent=47 // pred_check_branch
        %834 = sbr.rel (%p832) target = $region52
      $region51: #{contrastive_encoder_forward.1} parent=47 // pred_region
        %s835 = smul.u32 16, %s18
      $region52: #{contrastive_encoder_forward.1} parent=47 // pred_fallthru
        _
    $region48: #{contrastive_encoder_forward.1} parent=5 // pred_fallthru
      _
    %p836 = scmp.le.s32.totalorder 2, %s13
    // Predicated region
    $region53: #{contrastive_encoder_forward.1} parent=5 // pred_check
      %p837 = pneg %p836
    $region54: #{contrastive_encoder_forward.1} parent=5 // pred_check_branch
      %839 = sbr.rel (%p837) target = $region56
    $region55: #{contrastive_encoder_forward.1} parent=5 // pred_region
      %s840 = ssub.s32 %s13, 2
      // Predicated region
      $region57: #{contrastive_encoder_forward.1} parent=55 // pred_check
        %p841 = pneg %p194
      $region58: #{contrastive_encoder_forward.1} parent=55 // pred_check_branch
        %843 = sbr.rel (%p841) target = $region60
      $region59: #{contrastive_encoder_forward.1} parent=55 // pred_region
        %s844 = smul.u32 16, %s19
        %p845 = scmp.lt.s32.totalorder %s844, 31
        %s846 = scalar_select %p845, %s844, 31
        %s847 = smul.addr %s846, 4
        %s848 = scalar_lea.vmem %s7, %s847
      $region60: #{contrastive_encoder_forward.1} parent=55 // pred_fallthru
        _
    $region56: #{contrastive_encoder_forward.1} parent=5 // pred_fallthru
      _
  $region6: #{contrastive_encoder_forward.1} parent=0 // loop_footer
    %s17 = sadd.s32 1, %s13
  $region7: #{contrastive_encoder_forward.1} parent=0 // loop_footer_branch
    %12 = sbr.rel target = $region3
  $region8: #{contrastive_encoder_forward.1} parent=0 // loop_exit
    _

</llo_original>
